<compile_context>
chip_gen: v7x
topology: tpu7x:2x2x1
jax: 0.10.0
libtpu: 0.0.40
codegen_flags: <defaults>
</compile_context>

<pallas_src>
import jax
import jax.numpy as jnp
from jax.experimental import pallas as pl
from jax.experimental.pallas import tpu as pltpu


def _round_up(v, m):
    return ((v + m - 1) // m) * m


def _make_kernel(num_modalities, rank, out_dim, vpu_rank_sum):
    M = num_modalities

    def kernel(*refs):
        # refs = x_0..x_{M-1}, W_0..W_{M-1}, c_0..c_{M-1}, [S], bias, out
        x_refs = refs[:M]
        w_refs = refs[M:2 * M]
        c_refs = refs[2 * M:3 * M]
        if vpu_rank_sum:
            s_ref = None
            b_ref = refs[3 * M]
            out_ref = refs[3 * M + 1]
        else:
            s_ref = refs[3 * M]
            b_ref = refs[3 * M + 1]
            out_ref = refs[3 * M + 2]

        # z_i = x_i @ W_i + c_i  (c_i replaces the ones-column of the
        # reference); fused = prod_i z_i, all accumulated in f32.
        fused = None
        for x_ref, w_ref, c_ref in zip(x_refs, w_refs, c_refs):
            z = jnp.dot(x_ref[...], w_ref[...],
                        preferred_element_type=jnp.float32) + c_ref[...]
            fused = z if fused is None else fused * z

        if vpu_rank_sum:
            # Fusion weights were folded into the last modality's factor, so
            # the rank contraction is a sum of lane-aligned slices (VPU only,
            # keeps the MXU free of the 1/rank-dense S matmul).
            acc = fused[:, 0:out_dim]
            for r in range(1, rank):
                acc = acc + fused[:, r * out_dim:(r + 1) * out_dim]
            out_ref[...] = (acc + b_ref[...]).astype(out_ref.dtype)
        else:
            # Rank contraction + fusion weights + lane padding in one matmul:
            # S[r*O + o, o] = w_r ; columns >= out_dim are zero.
            out = jnp.dot(fused, s_ref[...], preferred_element_type=jnp.float32)
            out_ref[...] = (out + b_ref[...]).astype(out_ref.dtype)

    return kernel


def low_rank_tensor_fusion(modalities, factors, fusion_weights, fusion_bias,
                           flatten=True, compute_dtype=jnp.bfloat16):
    """Pallas implementation of LowRankTensorFusion.forward.

    modalities:      list of arrays, each (B, ...) — flattened to (B, D_i)
    factors:         list of arrays, each (rank, D_i + 1, output_dim)
    fusion_weights:  (1, rank)
    fusion_bias:     (1, output_dim)
    compute_dtype:   dtype for the modality/factor matmul inputs (default
                     bfloat16; accumulation is always f32). Pass jnp.float32
                     to match the PyTorch module bit-for-bit-ish.
    returns:         (B, output_dim), dtype of modalities[0]
    """
    B = int(modalities[0].shape[0])
    rank, _, out_dim = (int(s) for s in factors[0].shape)
    M = len(modalities)
    out_dtype = modalities[0].dtype

    # ---- layout plumbing (wrapper-side parameter repacking) -----------------
    xs = [(m.reshape(B, -1) if flatten else m) for m in modalities]
    dims = [int(x.shape[1]) for x in xs]

    # factor body (rank, D_i, O) -> W_i (D_i, rank*O) (rank-major columns);
    # factor bias row (rank, O)  -> c_i (1, rank*O)   (same column ordering).
    Ws, Cs = [], []
    for f in factors:
        d_i = int(f.shape[1]) - 1
        f32 = f.astype(jnp.float32)
        Ws.append(jnp.transpose(f32[:, 1:, :], (1, 0, 2)).reshape(d_i, rank * out_dim))
        Cs.append(f32[:, 0, :].reshape(1, rank * out_dim))

    w_vec = fusion_weights.reshape(rank).astype(jnp.float32)
    vpu_rank_sum = (out_dim % 128 == 0)
    if vpu_rank_sum:
        # Fold fusion weights into the last modality's factor (column block r
        # of W/c scaled by w_r); kernel then just sums the rank slices.
        scale = jnp.repeat(w_vec, out_dim)[None, :]            # (1, rank*O)
        Ws[-1] = Ws[-1] * scale
        Cs[-1] = Cs[-1] * scale
        out_cols = out_dim
        S = None
        bias_blk = fusion_bias.reshape(1, out_dim).astype(jnp.float32)
    else:
        # Lane-dense padded output via the selector matmul.
        out_cols = _round_up(out_dim, 128)
        eye = jnp.eye(out_dim, out_cols, dtype=jnp.float32)     # (O, O_pad)
        S = (w_vec[:, None, None] * eye[None, :, :]).reshape(rank * out_dim, out_cols)
        bias_blk = jnp.pad(fusion_bias.reshape(1, out_dim).astype(jnp.float32),
                           ((0, 0), (0, out_cols - out_dim)))

    if compute_dtype is not None:
        xs = [x.astype(compute_dtype) for x in xs]
        Ws = [w.astype(compute_dtype) for w in Ws]

    x_itemsize = jnp.dtype(xs[0].dtype).itemsize
    out_itemsize = jnp.dtype(out_dtype).itemsize
    param_bytes = (sum(w.size * jnp.dtype(w.dtype).itemsize for w in Ws)
                   + sum(c.size * 4 for c in Cs)
                   + (0 if S is None else S.size * 4)
                   + bias_blk.size * 4)

    # ---- VMEM budget, branched on chip --------------------------------------
    try:
        vmem_cap = int(pltpu.get_tpu_info().vmem_capacity_bytes)
    except Exception:
        vmem_cap = 64 * 1024 * 1024           # conservative (v7x per-TC)
    if vmem_cap >= 128 * 1024 * 1024:
        vmem_limit = 96 * 1024 * 1024         # v5e / v6e: 128 MiB physical
    else:
        vmem_limit = 32 * 1024 * 1024         # v7x: 64 MiB per TC
    vmem_budget = (vmem_limit * 3) // 4

    # Sublane alignment: 16 covers both f32 (8) and bf16 (16) input tiles and
    # keeps output stores unmasked.
    align = 16

    def _build_and_run(single_buffer_params):
        param_factor = 1 if single_buffer_params else 2

        def tile_bytes(tb):
            # streamed (double-buffered) x tiles + output tile
            stream = 2 * (sum(tb * d * x_itemsize for d in dims)
                          + tb * out_cols * out_itemsize)
            # in-kernel f32 intermediates: z, fused, pre-cast second result
            inter = 3 * tb * rank * out_dim * 4
            return stream + inter + param_factor * param_bytes

        if B <= align:
            TB = _round_up(B, align)
        else:
            # Start large (amortize ~0.35 us/step) but aim for >= 2 batch
            # tiles so both v7x TensorCores get work; halve until it fits.
            TB = min(1024, _round_up((B + 1) // 2, align))
            while TB > align and tile_bytes(TB) > vmem_budget:
                TB = _round_up(TB // 2, align)

        B_pad = _round_up(B, TB)
        xs_p = ([jnp.pad(x, ((0, B_pad - B), (0, 0))) for x in xs]
                if B_pad != B else list(xs))
        grid = (B_pad // TB,)

        # Grid-invariant parameters: single-buffer (constant index_map).
        param_kw = ({"pipeline_mode": pl.Buffered(1)}
                    if single_buffer_params else {})

        in_specs = [pl.BlockSpec((TB, d), lambda b: (b, 0)) for d in dims]
        in_specs += [pl.BlockSpec(w.shape, lambda b: (0, 0), **param_kw) for w in Ws]
        in_specs += [pl.BlockSpec(c.shape, lambda b: (0, 0), **param_kw) for c in Cs]
        args = list(xs_p) + list(Ws) + list(Cs)
        if S is not None:
            in_specs.append(pl.BlockSpec(S.shape, lambda b: (0, 0), **param_kw))
            args.append(S)
        in_specs.append(pl.BlockSpec(bias_blk.shape, lambda b: (0, 0), **param_kw))
        args.append(bias_blk)

        flops = 2 * B_pad * sum(dims) * rank * out_dim
        if S is not None:
            flops += 2 * B_pad * rank * out_dim * out_cols
        bytes_accessed = (sum(B_pad * d * x_itemsize for d in dims)
                          + param_bytes + B_pad * out_cols * out_itemsize)

        return pl.pallas_call(
            _make_kernel(M, rank, out_dim, vpu_rank_sum),
            out_shape=jax.ShapeDtypeStruct((B_pad, out_cols), out_dtype),
            grid_spec=pltpu.PrefetchScalarGridSpec(
                num_scalar_prefetch=0,
                grid=grid,
                in_specs=in_specs,
                out_specs=pl.BlockSpec((TB, out_cols), lambda b: (b, 0)),
            ),
            compiler_params=pltpu.CompilerParams(
                dimension_semantics=("parallel",),   # independent batch tiles
                vmem_limit_bytes=vmem_limit),
            cost_estimate=pl.CostEstimate(flops=flops, transcendentals=0,
                                          bytes_accessed=bytes_accessed),
        )(*args)

    try:
        out = _build_and_run(True)
    except Exception:
        # pl.Buffered(1) / pipeline_mode unsupported on this jax version ->
        # fall back to default double-buffered parameter blocks.
        out = _build_and_run(False)

    return out[:B, :out_dim]


def _reference(modalities, factors, fusion_weights, fusion_bias, flatten=True):
    """Pure-JAX reference matching the PyTorch forward semantics."""
    B = modalities[0].shape[0]
    fused = None
    for m, f in zip(modalities, factors):
        m2 = m.reshape(B, -1) if flatten else m
        x = jnp.concatenate([jnp.ones((B, 1), m2.dtype), m2], axis=1)
        z = jnp.einsum('bd,rdo->rbo', x, f)          # (rank, B, out)
        fused = z if fused is None else fused * z
    out = jnp.einsum('kr,rbo->kbo', fusion_weights, fused)[0]  # (B, out)
    return out + fusion_bias


def _xavier_normal(key, shape):
    # fan_in/fan_out as torch computes for an nD tensor
    receptive = 1
    for s in shape[2:]:
        receptive *= s
    fan_out = shape[0] * receptive
    fan_in = shape[1] * receptive
    std = (2.0 / (fan_in + fan_out)) ** 0.5
    return std * jax.random.normal(key, shape, dtype=jnp.float32)


if __name__ == "__main__":
    key = jax.random.PRNGKey(0)
    keys = jax.random.split(key, 10)

    # ---- Case 1: out_dim=32 (padded-S path), tiny batch ---------------------
    B1, rank1, O1 = 2, 4, 32
    m0 = jax.random.normal(keys[0], (B1, 15), dtype=jnp.float32)
    m1 = jax.random.normal(keys[1], (B1, 4, 8), dtype=jnp.float32)
    mods1 = [m0, m1]
    facs1 = [_xavier_normal(keys[2], (rank1, 15 + 1, O1)),
             _xavier_normal(keys[3], (rank1, 32 + 1, O1))]
    fw1 = _xavier_normal(keys[4], (1, rank1))
    fb1 = jnp.zeros((1, O1), dtype=jnp.float32)
    ref1 = _reference(mods1, facs1, fw1, fb1)

    out1 = jax.block_until_ready(low_rank_tensor_fusion(
        mods1, facs1, fw1, fb1, compute_dtype=jnp.float32))
    assert out1.shape == (B1, O1)
    assert jnp.allclose(out1, ref1, atol=1e-4, rtol=1e-4), "f32 S-path mismatch"

    out1b = jax.block_until_ready(low_rank_tensor_fusion(mods1, facs1, fw1, fb1))
    assert jnp.allclose(out1b, ref1, atol=3e-2, rtol=3e-2), "bf16 S-path mismatch"

    # ---- Case 2: out_dim=128 (VPU rank-contraction path), batch tiling ------
    B2, rank2, O2 = 300, 4, 128
    n0 = jax.random.normal(keys[5], (B2, 20), dtype=jnp.float32)
    n1 = jax.random.normal(keys[6], (B2, 6, 10), dtype=jnp.float32)
    mods2 = [n0, n1]
    facs2 = [_xavier_normal(keys[7], (rank2, 20 + 1, O2)),
             _xavier_normal(keys[8], (rank2, 60 + 1, O2))]
    fw2 = _xavier_normal(keys[9], (1, rank2))
    fb2 = 0.1 * jnp.ones((1, O2), dtype=jnp.float32)
    ref2 = _reference(mods2, facs2, fw2, fb2)

    out2 = jax.block_until_ready(low_rank_tensor_fusion(
        mods2, facs2, fw2, fb2, compute_dtype=jnp.float32))
    assert out2.shape == (B2, O2)
    assert jnp.allclose(out2, ref2, atol=1e-4, rtol=1e-4), "f32 VPU-path mismatch"

    out2b = jax.block_until_ready(low_rank_tensor_fusion(mods2, facs2, fw2, fb2))
    assert jnp.allclose(out2b, ref2, atol=3e-2, rtol=3e-2), "bf16 VPU-path mismatch"

    print("KERNEL_OK")
</pallas_src>

<mosaic_0001>
module attributes {stable_mosaic.version = 11 : i64} {
  func.func @kernel(%arg0: i32, %arg1: memref<16x15xf32, #tpu.memory_space<vmem>>, %arg2: memref<16x32xf32, #tpu.memory_space<vmem>>, %arg3: memref<15x128xf32, #tpu.memory_space<vmem>>, %arg4: memref<32x128xf32, #tpu.memory_space<vmem>>, %arg5: memref<1x128xf32, #tpu.memory_space<vmem>>, %arg6: memref<1x128xf32, #tpu.memory_space<vmem>>, %arg7: memref<128x128xf32, #tpu.memory_space<vmem>>, %arg8: memref<1x128xf32, #tpu.memory_space<vmem>>, %arg9: memref<16x128xf32, #tpu.memory_space<vmem>>) attributes {dimension_semantics = [#tpu.dimension_semantics<parallel>], iteration_bounds = array<i64: 1>, scalar_prefetch = 0 : i64, scratch_operands = 0 : i64, tpu.core_type = #tpu.core_type<tc>, window_params = [{transform_indices = @transform_0, window_bounds = array<i64: 16, 15>}, {transform_indices = @transform_1, window_bounds = array<i64: 16, 32>}, {pipeline_mode = #tpu.pipeline_mode<synchronous>, transform_indices = @transform_2, window_bounds = array<i64: 15, 128>}, {pipeline_mode = #tpu.pipeline_mode<synchronous>, transform_indices = @transform_3, window_bounds = array<i64: 32, 128>}, {pipeline_mode = #tpu.pipeline_mode<synchronous>, transform_indices = @transform_4, window_bounds = array<i64: 1, 128>}, {pipeline_mode = #tpu.pipeline_mode<synchronous>, transform_indices = @transform_5, window_bounds = array<i64: 1, 128>}, {pipeline_mode = #tpu.pipeline_mode<synchronous>, transform_indices = @transform_6, window_bounds = array<i64: 128, 128>}, {pipeline_mode = #tpu.pipeline_mode<synchronous>, transform_indices = @transform_7, window_bounds = array<i64: 1, 128>}, {transform_indices = @transform_8, window_bounds = array<i64: 16, 128>}]} {
    %c0 = arith.constant 0 : index
    %c0_0 = arith.constant 0 : index
    %0 = vector.load %arg1[%c0, %c0_0] : memref<16x15xf32, #tpu.memory_space<vmem>>, vector<16x15xf32>
    %c0_1 = arith.constant 0 : index
    %c0_2 = arith.constant 0 : index
    %1 = vector.load %arg3[%c0_1, %c0_2] : memref<15x128xf32, #tpu.memory_space<vmem>>, vector<15x128xf32>
    %cst = arith.constant dense<0.000000e+00> : vector<16x128xf32>
    %2 = tpu.matmul %0, %1, %cst {dimension_numbers = #tpu.dot_dimension_numbers<[1], [0], [0], [1], [0, 0, 1, 1], [], []>} : vector<16x15xf32>, vector<15x128xf32>, vector<16x128xf32> -> vector<16x128xf32>
    %c0_3 = arith.constant 0 : index
    %c0_4 = arith.constant 0 : index
    %3 = vector.load %arg5[%c0_3, %c0_4] : memref<1x128xf32, #tpu.memory_space<vmem>>, vector<1x128xf32>
    %4 = vector.broadcast %3 : vector<1x128xf32> to vector<16x128xf32>
    %5 = arith.addf %2, %4 : vector<16x128xf32>
    %c0_5 = arith.constant 0 : index
    %c0_6 = arith.constant 0 : index
    %6 = vector.load %arg2[%c0_5, %c0_6] : memref<16x32xf32, #tpu.memory_space<vmem>>, vector<16x32xf32>
    %c0_7 = arith.constant 0 : index
    %c0_8 = arith.constant 0 : index
    %7 = vector.load %arg4[%c0_7, %c0_8] : memref<32x128xf32, #tpu.memory_space<vmem>>, vector<32x128xf32>
    %cst_9 = arith.constant dense<0.000000e+00> : vector<16x128xf32>
    %8 = tpu.matmul %6, %7, %cst_9 {dimension_numbers = #tpu.dot_dimension_numbers<[1], [0], [0], [1], [0, 0, 1, 1], [], []>} : vector<16x32xf32>, vector<32x128xf32>, vector<16x128xf32> -> vector<16x128xf32>
    %c0_10 = arith.constant 0 : index
    %c0_11 = arith.constant 0 : index
    %9 = vector.load %arg6[%c0_10, %c0_11] : memref<1x128xf32, #tpu.memory_space<vmem>>, vector<1x128xf32>
    %10 = vector.broadcast %9 : vector<1x128xf32> to vector<16x128xf32>
    %11 = arith.addf %8, %10 : vector<16x128xf32>
    %12 = arith.mulf %5, %11 : vector<16x128xf32>
    %c0_12 = arith.constant 0 : index
    %c0_13 = arith.constant 0 : index
    %13 = vector.load %arg7[%c0_12, %c0_13] : memref<128x128xf32, #tpu.memory_space<vmem>>, vector<128x128xf32>
    %cst_14 = arith.constant dense<0.000000e+00> : vector<16x128xf32>
    %14 = tpu.matmul %12, %13, %cst_14 {dimension_numbers = #tpu.dot_dimension_numbers<[1], [0], [0], [1], [0, 0, 1, 1], [], []>} : vector<16x128xf32>, vector<128x128xf32>, vector<16x128xf32> -> vector<16x128xf32>
    %c0_15 = arith.constant 0 : index
    %c0_16 = arith.constant 0 : index
    %15 = vector.load %arg8[%c0_15, %c0_16] : memref<1x128xf32, #tpu.memory_space<vmem>>, vector<1x128xf32>
    %16 = vector.broadcast %15 : vector<1x128xf32> to vector<16x128xf32>
    %17 = arith.addf %14, %16 : vector<16x128xf32>
    %c0_17 = arith.constant 0 : index
    %c0_18 = arith.constant 0 : index
    %18 = vector.load %arg9[%c0_17, %c0_18] : memref<16x128xf32, #tpu.memory_space<vmem>>, vector<16x128xf32>
    tpu.vector_store %arg9[%c0_17, %c0_18], %17 {strides = array<i32>} : memref<16x128xf32, #tpu.memory_space<vmem>>, vector<16x128xf32>,
    return
  }
  func.func @transform_0(%arg0: i32) -> (i32, i32) {
    %c0_i32 = arith.constant 0 : i32
    %c0_i32_0 = arith.constant 0 : i32
    return %arg0, %c0_i32 : i32, i32
  }
  func.func @transform_1(%arg0: i32) -> (i32, i32) {
    %c0_i32 = arith.constant 0 : i32
    %c0_i32_0 = arith.constant 0 : i32
    return %arg0, %c0_i32 : i32, i32
  }
  func.func @transform_2(%arg0: i32) -> (i32, i32) {
    %c0_i32 = arith.constant 0 : i32
    %c0_i32_0 = arith.constant 0 : i32
    %c0_i32_1 = arith.constant 0 : i32
    return %c0_i32, %c0_i32_0 : i32, i32
  }
  func.func @transform_3(%arg0: i32) -> (i32, i32) {
    %c0_i32 = arith.constant 0 : i32
    %c0_i32_0 = arith.constant 0 : i32
    %c0_i32_1 = arith.constant 0 : i32
    return %c0_i32, %c0_i32_0 : i32, i32
  }
  func.func @transform_4(%arg0: i32) -> (i32, i32) {
    %c0_i32 = arith.constant 0 : i32
    %c0_i32_0 = arith.constant 0 : i32
    %c0_i32_1 = arith.constant 0 : i32
    return %c0_i32, %c0_i32_0 : i32, i32
  }
  func.func @transform_5(%arg0: i32) -> (i32, i32) {
    %c0_i32 = arith.constant 0 : i32
    %c0_i32_0 = arith.constant 0 : i32
    %c0_i32_1 = arith.constant 0 : i32
    return %c0_i32, %c0_i32_0 : i32, i32
  }
  func.func @transform_6(%arg0: i32) -> (i32, i32) {
    %c0_i32 = arith.constant 0 : i32
    %c0_i32_0 = arith.constant 0 : i32
    %c0_i32_1 = arith.constant 0 : i32
    return %c0_i32, %c0_i32_0 : i32, i32
  }
  func.func @transform_7(%arg0: i32) -> (i32, i32) {
    %c0_i32 = arith.constant 0 : i32
    %c0_i32_0 = arith.constant 0 : i32
    %c0_i32_1 = arith.constant 0 : i32
    return %c0_i32, %c0_i32_0 : i32, i32
  }
  func.func @transform_8(%arg0: i32) -> (i32, i32) {
    %c0_i32 = arith.constant 0 : i32
    %c0_i32_0 = arith.constant 0 : i32
    return %arg0, %c0_i32 : i32, i32
  }
}

module attributes {stable_mosaic.version = 11 : i64} {
  func.func @kernel(%arg0: i32, %arg1: memref<16x15xf32, #tpu.memory_space<vmem>>, %arg2: memref<16x32xf32, #tpu.memory_space<vmem>>, %arg3: memref<15x128xf32, #tpu.memory_space<vmem>>, %arg4: memref<32x128xf32, #tpu.memory_space<vmem>>, %arg5: memref<1x128xf32, #tpu.memory_space<vmem>>, %arg6: memref<1x128xf32, #tpu.memory_space<vmem>>, %arg7: memref<128x128xf32, #tpu.memory_space<vmem>>, %arg8: memref<1x128xf32, #tpu.memory_space<vmem>>, %arg9: memref<16x128xf32, #tpu.memory_space<vmem>>) attributes {dimension_semantics = [#tpu.dimension_semantics<parallel>], iteration_bounds = array<i64: 1>, scalar_prefetch = 0 : i64, scratch_operands = 0 : i64, tpu.core_type = #tpu.core_type<tc>, window_params = [{transform_indices = @transform_0, window_bounds = array<i64: 16, 15>}, {transform_indices = @transform_1, window_bounds = array<i64: 16, 32>}, {pipeline_mode = #tpu.pipeline_mode<synchronous>, transform_indices = @transform_2, window_bounds = array<i64: 15, 128>}, {pipeline_mode = #tpu.pipeline_mode<synchronous>, transform_indices = @transform_3, window_bounds = array<i64: 32, 128>}, {pipeline_mode = #tpu.pipeline_mode<synchronous>, transform_indices = @transform_4, window_bounds = array<i64: 1, 128>}, {pipeline_mode = #tpu.pipeline_mode<synchronous>, transform_indices = @transform_5, window_bounds = array<i64: 1, 128>}, {pipeline_mode = #tpu.pipeline_mode<synchronous>, transform_indices = @transform_6, window_bounds = array<i64: 128, 128>}, {pipeline_mode = #tpu.pipeline_mode<synchronous>, transform_indices = @transform_7, window_bounds = array<i64: 1, 128>}, {transform_indices = @transform_8, window_bounds = array<i64: 16, 128>}]} {
    %c0 = arith.constant 0 : index
    %c0_0 = arith.constant 0 : index
    %0 = vector.load %arg1[%c0, %c0_0] : memref<16x15xf32, #tpu.memory_space<vmem>>, vector<16x15xf32>
    %c0_1 = arith.constant 0 : index
    %c0_2 = arith.constant 0 : index
    %1 = vector.load %arg3[%c0_1, %c0_2] : memref<15x128xf32, #tpu.memory_space<vmem>>, vector<15x128xf32>
    %cst = arith.constant dense<0.000000e+00> : vector<16x128xf32>
    %2 = tpu.matmul %0, %1, %cst {dimension_numbers = #tpu.dot_dimension_numbers<[1], [0], [0], [1], [0, 0, 1, 1], [], []>} : vector<16x15xf32>, vector<15x128xf32>, vector<16x128xf32> -> vector<16x128xf32>
    %c0_3 = arith.constant 0 : index
    %c0_4 = arith.constant 0 : index
    %3 = vector.load %arg5[%c0_3, %c0_4] : memref<1x128xf32, #tpu.memory_space<vmem>>, vector<1x128xf32>
    %4 = vector.broadcast %3 : vector<1x128xf32> to vector<16x128xf32>
    %5 = arith.addf %2, %4 : vector<16x128xf32>
    %c0_5 = arith.constant 0 : index
    %c0_6 = arith.constant 0 : index
    %6 = vector.load %arg2[%c0_5, %c0_6] : memref<16x32xf32, #tpu.memory_space<vmem>>, vector<16x32xf32>
    %c0_7 = arith.constant 0 : index
    %c0_8 = arith.constant 0 : index
    %7 = vector.load %arg4[%c0_7, %c0_8] : memref<32x128xf32, #tpu.memory_space<vmem>>, vector<32x128xf32>
    %cst_9 = arith.constant dense<0.000000e+00> : vector<16x128xf32>
    %8 = tpu.matmul %6, %7, %cst_9 {dimension_numbers = #tpu.dot_dimension_numbers<[1], [0], [0], [1], [0, 0, 1, 1], [], []>} : vector<16x32xf32>, vector<32x128xf32>, vector<16x128xf32> -> vector<16x128xf32>
    %c0_10 = arith.constant 0 : index
    %c0_11 = arith.constant 0 : index
    %9 = vector.load %arg6[%c0_10, %c0_11] : memref<1x128xf32, #tpu.memory_space<vmem>>, vector<1x128xf32>
    %10 = vector.broadcast %9 : vector<1x128xf32> to vector<16x128xf32>
    %11 = arith.addf %8, %10 : vector<16x128xf32>
    %12 = arith.mulf %5, %11 : vector<16x128xf32>
    %c0_12 = arith.constant 0 : index
    %c0_13 = arith.constant 0 : index
    %13 = vector.load %arg7[%c0_12, %c0_13] : memref<128x128xf32, #tpu.memory_space<vmem>>, vector<128x128xf32>
    %cst_14 = arith.constant dense<0.000000e+00> : vector<16x128xf32>
    %14 = tpu.matmul %12, %13, %cst_14 {dimension_numbers = #tpu.dot_dimension_numbers<[1], [0], [0], [1], [0, 0, 1, 1], [], []>} : vector<16x128xf32>, vector<128x128xf32>, vector<16x128xf32> -> vector<16x128xf32>
    %c0_15 = arith.constant 0 : index
    %c0_16 = arith.constant 0 : index
    %15 = vector.load %arg8[%c0_15, %c0_16] : memref<1x128xf32, #tpu.memory_space<vmem>>, vector<1x128xf32>
    %16 = vector.broadcast %15 : vector<1x128xf32> to vector<16x128xf32>
    %17 = arith.addf %14, %16 : vector<16x128xf32>
    %c0_17 = arith.constant 0 : index
    %c0_18 = arith.constant 0 : index
    %18 = vector.load %arg9[%c0_17, %c0_18] : memref<16x128xf32, #tpu.memory_space<vmem>>, vector<16x128xf32>
    tpu.vector_store %arg9[%c0_17, %c0_18], %17 {strides = array<i32>} : memref<16x128xf32, #tpu.memory_space<vmem>>, vector<16x128xf32>,
    return
  }
  func.func @transform_0(%arg0: i32) -> (i32, i32) {
    %c0_i32 = arith.constant 0 : i32
    %c0_i32_0 = arith.constant 0 : i32
    return %arg0, %c0_i32 : i32, i32
  }
  func.func @transform_1(%arg0: i32) -> (i32, i32) {
    %c0_i32 = arith.constant 0 : i32
    %c0_i32_0 = arith.constant 0 : i32
    return %arg0, %c0_i32 : i32, i32
  }
  func.func @transform_2(%arg0: i32) -> (i32, i32) {
    %c0_i32 = arith.constant 0 : i32
    %c0_i32_0 = arith.constant 0 : i32
    %c0_i32_1 = arith.constant 0 : i32
    return %c0_i32, %c0_i32_0 : i32, i32
  }
  func.func @transform_3(%arg0: i32) -> (i32, i32) {
    %c0_i32 = arith.constant 0 : i32
    %c0_i32_0 = arith.constant 0 : i32
    %c0_i32_1 = arith.constant 0 : i32
    return %c0_i32, %c0_i32_0 : i32, i32
  }
  func.func @transform_4(%arg0: i32) -> (i32, i32) {
    %c0_i32 = arith.constant 0 : i32
    %c0_i32_0 = arith.constant 0 : i32
    %c0_i32_1 = arith.constant 0 : i32
    return %c0_i32, %c0_i32_0 : i32, i32
  }
  func.func @transform_5(%arg0: i32) -> (i32, i32) {
    %c0_i32 = arith.constant 0 : i32
    %c0_i32_0 = arith.constant 0 : i32
    %c0_i32_1 = arith.constant 0 : i32
    return %c0_i32, %c0_i32_0 : i32, i32
  }
  func.func @transform_6(%arg0: i32) -> (i32, i32) {
    %c0_i32 = arith.constant 0 : i32
    %c0_i32_0 = arith.constant 0 : i32
    %c0_i32_1 = arith.constant 0 : i32
    return %c0_i32, %c0_i32_0 : i32, i32
  }
  func.func @transform_7(%arg0: i32) -> (i32, i32) {
    %c0_i32 = arith.constant 0 : i32
    %c0_i32_0 = arith.constant 0 : i32
    %c0_i32_1 = arith.constant 0 : i32
    return %c0_i32, %c0_i32_0 : i32, i32
  }
  func.func @transform_8(%arg0: i32) -> (i32, i32) {
    %c0_i32 = arith.constant 0 : i32
    %c0_i32_0 = arith.constant 0 : i32
    return %arg0, %c0_i32 : i32, i32
  }
}

</mosaic_0001>

<llo_original>
// kernel: tpu_custom_call.1
$region0: #{tpu_custom_call.1}
  #allocation0 [shape = 'u32[]', space=smem, size = 0x4, offset = 0x4, fixed_abs, tag = 'smem constant byte address 0x4 - core index']
  #allocation1 [shape = 'u32[144,128]{1,0:T(1,128)}', space=vmem, size = 0x12000, scoped, tag = 'internal scratch']
  %s0 = inlined_call_operand.hbm [shape: f32[16,15], index: 0, kind: input, shape index: {}]
  %s1 = inlined_call_operand.hbm [shape: f32[16,32], index: 1, kind: input, shape index: {}]
  %s2 = inlined_call_operand.hbm [shape: f32[15,128], index: 2, kind: input, shape index: {}]
  %s3 = inlined_call_operand.hbm [shape: f32[32,128], index: 3, kind: input, shape index: {}]
  %s4 = inlined_call_operand.vmem [shape: f32[1,128], index: 4, kind: input, shape index: {}]
  %s5 = inlined_call_operand.vmem [shape: f32[1,128], index: 5, kind: input, shape index: {}]
  %s6 = inlined_call_operand.hbm [shape: f32[128,128], index: 6, kind: input, shape index: {}]
  %s7 = inlined_call_operand.vmem [shape: f32[1,128], index: 7, kind: input, shape index: {}]
  %s8 = inlined_call_operand.hbm [shape: f32[16,128], index: 8, kind: output, shape index: {}]
  %s9 = sld [smem:[#allocation0]]
  $region62: #{tpu_custom_call.1} parent=0
    _
  %s11 = ssub.s32 1, %s9
  %s12 = scalar_select 0, %s11, %s9
  $region1: #{tpu_custom_call.1} parent=0
    #allocation2 [shape = 'u8[8192]{0}', space=vmem, size = 0x2000, scoped, tag = 'input window, operand 0, single buffered']
    #allocation3 [shape = 's32[1]{0}', space=sflag, size = 0x4, scoped, tag = 'scoped memory for tpu_custom_call.1']
    #allocation4 [shape = 's32[1]{0}', space=sflag, size = 0x4, scoped, tag = 'scoped memory for tpu_custom_call.1']
    #allocation5 [shape = 'u8[8192]{0}', space=vmem, size = 0x2000, scoped, tag = 'input window, operand 1, single buffered']
    #allocation6 [shape = 's32[1]{0}', space=sflag, size = 0x4, scoped, tag = 'scoped memory for tpu_custom_call.1']
    #allocation7 [shape = 'u8[8192]{0}', space=vmem, size = 0x2000, scoped, tag = 'input window, operand 2, single buffered']
    #allocation8 [shape = 'u8[16384]{0}', space=vmem, size = 0x4000, scoped, tag = 'input window, operand 3, single buffered']
    #allocation9 [shape = 's32[1]{0}', space=sflag, size = 0x4, scoped, tag = 'scoped memory for tpu_custom_call.1']
    #allocation10 [shape = 'u8[65536]{0}', space=vmem, size = 0x10000, scoped, tag = 'input window, operand 6, single buffered']
    #allocation11 [shape = 'u8[8192]{0}', space=vmem, size = 0x2000, scoped, tag = 'output window, operand 0, single buffered']
    %13 = vsyncpa [#allocation3], 0
    %14 = vsyncpa [#allocation6], 0
    %15 = vsyncpa [#allocation9], 0
    %16 = vsyncpa [#allocation4], 0
    // Predicated region
    $region2: #{tpu_custom_call.1} parent=1 // pred_check
      _
    $region3: #{tpu_custom_call.1} parent=1 // pred_check_branch
      %18 = sbr.rel (0) target = $region5
    $region4: #{tpu_custom_call.1} parent=1 // pred_region
      %s20 = ssub.s32 256, 256
      %21 = vsyncadd [#allocation3], %s20
      %s22 = sshll.u32 [#allocation2], 4
      %s23 = int_to_ptr.vmem [resolvable:$true] %s22
      %28 = dma.hbm_to_vmem [thread:$0]  %s0, 256, %s23, [#allocation3], 128, 128, 8
    $region5: #{tpu_custom_call.1} parent=1 // pred_fallthru
      _
    // Predicated region
    $region6: #{tpu_custom_call.1} parent=1 // pred_check
      _
    $region7: #{tpu_custom_call.1} parent=1 // pred_check_branch
      %30 = sbr.rel (0) target = $region9
    $region8: #{tpu_custom_call.1} parent=1 // pred_region
      %s32 = ssub.s32 256, 256
      %33 = vsyncadd [#allocation6], %s32
      %s34 = sshll.u32 [#allocation5], 4
      %s35 = int_to_ptr.vmem [resolvable:$true] %s34
      %40 = dma.hbm_to_vmem [thread:$0]  %s1, 256, %s35, [#allocation6], 128, 128, 8
    $region9: #{tpu_custom_call.1} parent=1 // pred_fallthru
      _
    // Predicated region
    $region10: #{tpu_custom_call.1} parent=1 // pred_check
      _
    $region11: #{tpu_custom_call.1} parent=1 // pred_check_branch
      %42 = sbr.rel (0) target = $region13
    $region12: #{tpu_custom_call.1} parent=1 // pred_region
      %s44 = ssub.s32 256, 256
      %45 = vsyncadd [#allocation6], %s44
      %s46 = sshll.u32 [#allocation7], 4
      %s47 = int_to_ptr.vmem [resolvable:$true] %s46
      %52 = dma.hbm_to_vmem [thread:$0]  %s2, 256, %s47, [#allocation6], 128, 128, 8
    $region13: #{tpu_custom_call.1} parent=1 // pred_fallthru
      _
    // Predicated region
    $region14: #{tpu_custom_call.1} parent=1 // pred_check
      _
    $region15: #{tpu_custom_call.1} parent=1 // pred_check_branch
      %54 = sbr.rel (0) target = $region17
    $region16: #{tpu_custom_call.1} parent=1 // pred_region
      %s56 = ssub.s32 512, 512
      %57 = vsyncadd [#allocation9], %s56
      %s58 = sshll.u32 [#allocation8], 4
      %s59 = int_to_ptr.vmem [resolvable:$true] %s58
      %64 = dma.hbm_to_vmem [thread:$0]  %s3, 512, %s59, [#allocation9], 128, 128, 8
    $region17: #{tpu_custom_call.1} parent=1 // pred_fallthru
      _
    // Predicated region
    $region18: #{tpu_custom_call.1} parent=1 // pred_check
      _
    $region19: #{tpu_custom_call.1} parent=1 // pred_check_branch
      %66 = sbr.rel (0) target = $region21
    $region20: #{tpu_custom_call.1} parent=1 // pred_region
      _
    $region21: #{tpu_custom_call.1} parent=1 // pred_fallthru
      _
    // Predicated region
    $region22: #{tpu_custom_call.1} parent=1 // pred_check
      _
    $region23: #{tpu_custom_call.1} parent=1 // pred_check_branch
      %68 = sbr.rel (0) target = $region25
    $region24: #{tpu_custom_call.1} parent=1 // pred_region
      _
    $region25: #{tpu_custom_call.1} parent=1 // pred_fallthru
      _
    // Predicated region
    $region26: #{tpu_custom_call.1} parent=1 // pred_check
      _
    $region27: #{tpu_custom_call.1} parent=1 // pred_check_branch
      %70 = sbr.rel (0) target = $region29
    $region28: #{tpu_custom_call.1} parent=1 // pred_region
      %s72 = ssub.s32 2048, 2048
      %73 = vsyncadd [#allocation9], %s72
      %s74 = sshll.u32 [#allocation10], 4
      %s75 = int_to_ptr.vmem [resolvable:$true] %s74
      %80 = dma.hbm_to_vmem [thread:$0]  %s6, 2048, %s75, [#allocation9], 128, 128, 8
    $region29: #{tpu_custom_call.1} parent=1 // pred_fallthru
      _
    // Predicated region
    $region30: #{tpu_custom_call.1} parent=1 // pred_check
      _
    $region31: #{tpu_custom_call.1} parent=1 // pred_check_branch
      %82 = sbr.rel (0) target = $region33
    $region32: #{tpu_custom_call.1} parent=1 // pred_region
      _
    $region33: #{tpu_custom_call.1} parent=1 // pred_fallthru
      _
    // Predicated region
    $region34: #{tpu_custom_call.1} parent=1 // pred_check
      _
    $region35: #{tpu_custom_call.1} parent=1 // pred_check_branch
      %84 = sbr.rel (0) target = $region37
    $region36: #{tpu_custom_call.1} parent=1 // pred_region
      %85 = dma.done [#allocation3], 256
    $region37: #{tpu_custom_call.1} parent=1 // pred_fallthru
      _
    // Predicated region
    $region38: #{tpu_custom_call.1} parent=1 // pred_check
      _
    $region39: #{tpu_custom_call.1} parent=1 // pred_check_branch
      %87 = sbr.rel (0) target = $region41
    $region40: #{tpu_custom_call.1} parent=1 // pred_region
      %88 = dma.done [#allocation6], 256
    $region41: #{tpu_custom_call.1} parent=1 // pred_fallthru
      _
    // Predicated region
    $region42: #{tpu_custom_call.1} parent=1 // pred_check
      _
    $region43: #{tpu_custom_call.1} parent=1 // pred_check_branch
      %90 = sbr.rel (0) target = $region45
    $region44: #{tpu_custom_call.1} parent=1 // pred_region
      %91 = dma.done [#allocation6], 256
    $region45: #{tpu_custom_call.1} parent=1 // pred_fallthru
      _
    // Predicated region
    $region46: #{tpu_custom_call.1} parent=1 // pred_check
      _
    $region47: #{tpu_custom_call.1} parent=1 // pred_check_branch
      %93 = sbr.rel (0) target = $region49
    $region48: #{tpu_custom_call.1} parent=1 // pred_region
      %94 = dma.done [#allocation9], 512
    $region49: #{tpu_custom_call.1} parent=1 // pred_fallthru
      _
    // Predicated region
    $region50: #{tpu_custom_call.1} parent=1 // pred_check
      _
    $region51: #{tpu_custom_call.1} parent=1 // pred_check_branch
      %96 = sbr.rel (0) target = $region53
    $region52: #{tpu_custom_call.1} parent=1 // pred_region
      %97 = dma.done [#allocation9], 2048
    $region53: #{tpu_custom_call.1} parent=1 // pred_fallthru
      _
    %v98 = vld [vmem:[#allocation2] sm:$0xff]
    %v99 = vld [vmem:[#allocation2 + $0x8] sm:$0xff]
    %v100 = vld [vmem:[#allocation7] sm:$0xff]
    %v101 = vld [vmem:[#allocation7 + $0x8] sm:$0x7f]
    %v102 = vld [vmem:[%s4] sm:$0x1]
    %v104 = vlaneseq
    %v105 = vshrl.u32 %v104, 7
    %v106 = vsub.s32 0, %v105
    %v107 = vrot.slane %v102, %v106
    %vm109 = vcmask 121856
    %v111 = vsel %vm109, %v98, 0
    %v114 = vsel %vm109, %v99, 0
    %vm116 = vcmask 1046528
    %v118 = vsel %vm116, %v101, 0
    %120 = vmatprep.subr.mxu0 0.0
    %121 = vmatpush1.msra.mxu0 %v100
    %122 = vmatprep.subr.mxu0 0.0
    %123 = vmatpush1.msra.mxu0 %v118
    %124 = vmatprep.subr.mxu0 0.0
    %125 = vmatpush1.msra.mxu0 0.0
    %126 = vmatprep.subr.mxu0 0.0
    %127 = vmatpush1.msra.mxu0 0.0
    %128 = vmatprep.subr.mxu0 0.0
    %129 = vmatpush1.msra.mxu0 0.0
    %130 = vmatprep.subr.mxu0 0.0
    %131 = vmatpush1.msra.mxu0 0.0
    %132 = vmatprep.subr.mxu0 0.0
    %133 = vmatpush1.msra.mxu0 0.0
    %134 = vmatprep.subr.mxu0 0.0
    %135 = vmatpush1.msra.mxu0 0.0
    %136 = vmatprep.subr.mxu0 0.0
    %137 = vmatpush1.msra.mxu0 0.0
    %138 = vmatprep.subr.mxu0 0.0
    %139 = vmatpush1.msra.mxu0 0.0
    %140 = vmatprep.subr.mxu0 0.0
    %141 = vmatpush1.msra.mxu0 0.0
    %142 = vmatprep.subr.mxu0 0.0
    %143 = vmatpush1.msra.mxu0 0.0
    %144 = vmatprep.subr.mxu0 0.0
    %145 = vmatpush1.msra.mxu0 0.0
    %146 = vmatprep.subr.mxu0 0.0
    %147 = vmatpush1.msra.mxu0 0.0
    %148 = vmatprep.subr.mxu0 0.0
    %149 = vmatpush1.msra.mxu0 0.0
    %150 = vmatprep.subr.mxu0 0.0
    %151 = vmatpush1.msra.mxu0 0.0
    %152 = vmatprep.subr.mxu0 0.0
    %153 = vmatpush1.msra.mxu0 0.0
    %154 = vmatprep.subr.mxu0 0.0
    %155 = vmatpush1.msra.mxu0 0.0
    %156 = vmatprep.subr.mxu0 0.0
    %157 = vmatpush1.msra.mxu0 0.0
    %158 = vmatprep.subr.mxu0 0.0
    %159 = vmatpush1.msra.mxu0 0.0
    %160 = vmatprep.subr.mxu0 0.0
    %161 = vmatpush1.msra.mxu0 0.0
    %162 = vmatprep.subr.mxu0 0.0
    %163 = vmatpush1.msra.mxu0 0.0
    %164 = vmatprep.subr.mxu0 0.0
    %165 = vmatpush1.msra.mxu0 0.0
    %166 = vmatprep.subr.mxu0 0.0
    %167 = vmatpush1.msra.mxu0 0.0
    %168 = vmatprep.subr.mxu0 0.0
    %169 = vmatpush1.msra.mxu0 0.0
    %170 = vmatprep.subr.mxu0 0.0
    %171 = vmatpush1.msra.mxu0 0.0
    %172 = vmatprep.subr.mxu0 0.0
    %173 = vmatpush1.msra.mxu0 0.0
    %174 = vmatprep.subr.mxu0 0.0
    %175 = vmatpush1.msra.mxu0 0.0
    %176 = vmatprep.subr.mxu0 0.0
    %177 = vmatpush1.msra.mxu0 0.0
    %178 = vmatprep.subr.mxu0 0.0
    %179 = vmatpush1.msra.mxu0 0.0
    %180 = vmatprep.subr.mxu0 0.0
    %181 = vmatpush1.msra.mxu0 0.0
    %182 = vmatprep.subr.mxu0 0.0
    %183 = vmatpush1.msra.mxu0 0.0
    %184 = vmatprep.mubr.f32.mxu0 0.0
    %185 = vmatmul.mubr.f32.gmra.mrb[0].mxu0 %v111
    %v186 = vpop.f32.mrb[0].mxu0
    %v187 = vadd.f32 %v107, %v186
    %v188 = vpop.f32.mrb[0].mxu0
    %189 = vmatprep.mubr.f32.mxu0 0.0
    %190 = vmatmul.mubr.f32.gmra.mrb[0].mxu0 %v114
    %v191 = vpop.f32.mrb[0].mxu0
    %v192 = vadd.f32 %v107, %v191
    %v193 = vpop.f32.mrb[0].mxu0
    %194 = vdwg.mxu0
    %v195 = vld [vmem:[#allocation5] sm:$0xff]
    %v196 = vld [vmem:[#allocation5 + $0x8] sm:$0xff]
    %v197 = vld [vmem:[#allocation8] sm:$0xff]
    %v198 = vld [vmem:[#allocation8 + $0x8] sm:$0xff]
    %v199 = vld [vmem:[#allocation8 + $0x10] sm:$0xff]
    %v200 = vld [vmem:[#allocation8 + $0x18] sm:$0xff]
    %v201 = vld [vmem:[%s5] sm:$0x1]
    %v203 = vlaneseq
    %v204 = vshrl.u32 %v203, 7
    %v205 = vsub.s32 0, %v204
    %v206 = vrot.slane %v201, %v205
    %vm208 = vcmask 261120
    %v210 = vsel %vm208, %v195, 0
    %v213 = vsel %vm208, %v196, 0
    %215 = vmatprep.subr.mxu0 0.0
    %216 = vmatpush1.msra.mxu0 %v197
    %217 = vmatprep.subr.mxu0 0.0
    %218 = vmatpush1.msra.mxu0 %v198
    %219 = vmatprep.subr.mxu0 0.0
    %220 = vmatpush1.msra.mxu0 %v199
    %221 = vmatprep.subr.mxu0 0.0
    %222 = vmatpush1.msra.mxu0 %v200
    %223 = vmatprep.subr.mxu0 0.0
    %224 = vmatpush1.msra.mxu0 0.0
    %225 = vmatprep.subr.mxu0 0.0
    %226 = vmatpush1.msra.mxu0 0.0
    %227 = vmatprep.subr.mxu0 0.0
    %228 = vmatpush1.msra.mxu0 0.0
    %229 = vmatprep.subr.mxu0 0.0
    %230 = vmatpush1.msra.mxu0 0.0
    %231 = vmatprep.subr.mxu0 0.0
    %232 = vmatpush1.msra.mxu0 0.0
    %233 = vmatprep.subr.mxu0 0.0
    %234 = vmatpush1.msra.mxu0 0.0
    %235 = vmatprep.subr.mxu0 0.0
    %236 = vmatpush1.msra.mxu0 0.0
    %237 = vmatprep.subr.mxu0 0.0
    %238 = vmatpush1.msra.mxu0 0.0
    %239 = vmatprep.subr.mxu0 0.0
    %240 = vmatpush1.msra.mxu0 0.0
    %241 = vmatprep.subr.mxu0 0.0
    %242 = vmatpush1.msra.mxu0 0.0
    %243 = vmatprep.subr.mxu0 0.0
    %244 = vmatpush1.msra.mxu0 0.0
    %245 = vmatprep.subr.mxu0 0.0
    %246 = vmatpush1.msra.mxu0 0.0
    %247 = vmatprep.subr.mxu0 0.0
    %248 = vmatpush1.msra.mxu0 0.0
    %249 = vmatprep.subr.mxu0 0.0
    %250 = vmatpush1.msra.mxu0 0.0
    %251 = vmatprep.subr.mxu0 0.0
    %252 = vmatpush1.msra.mxu0 0.0
    %253 = vmatprep.subr.mxu0 0.0
    %254 = vmatpush1.msra.mxu0 0.0
    %255 = vmatprep.subr.mxu0 0.0
    %256 = vmatpush1.msra.mxu0 0.0
    %257 = vmatprep.subr.mxu0 0.0
    %258 = vmatpush1.msra.mxu0 0.0
    %259 = vmatprep.subr.mxu0 0.0
    %260 = vmatpush1.msra.mxu0 0.0
    %261 = vmatprep.subr.mxu0 0.0
    %262 = vmatpush1.msra.mxu0 0.0
    %263 = vmatprep.subr.mxu0 0.0
    %264 = vmatpush1.msra.mxu0 0.0
    %265 = vmatprep.subr.mxu0 0.0
    %266 = vmatpush1.msra.mxu0 0.0
    %267 = vmatprep.subr.mxu0 0.0
    %268 = vmatpush1.msra.mxu0 0.0
    %269 = vmatprep.subr.mxu0 0.0
    %270 = vmatpush1.msra.mxu0 0.0
    %271 = vmatprep.subr.mxu0 0.0
    %272 = vmatpush1.msra.mxu0 0.0
    %273 = vmatprep.subr.mxu0 0.0
    %274 = vmatpush1.msra.mxu0 0.0
    %275 = vmatprep.subr.mxu0 0.0
    %276 = vmatpush1.msra.mxu0 0.0
    %277 = vmatprep.subr.mxu0 0.0
    %278 = vmatpush1.msra.mxu0 0.0
    %279 = vmatprep.mubr.f32.mxu0 0.0
    %280 = vmatmul.mubr.f32.gmra.mrb[0].mxu0 %v210
    %v281 = vpop.f32.mrb[0].mxu0
    %v282 = vadd.f32 %v206, %v281
    %v283 = vpop.f32.mrb[0].mxu0
    %284 = vmatprep.mubr.f32.mxu0 0.0
    %285 = vmatmul.mubr.f32.gmra.mrb[0].mxu0 %v213
    %v286 = vpop.f32.mrb[0].mxu0
    %v287 = vadd.f32 %v206, %v286
    %v288 = vpop.f32.mrb[0].mxu0
    %289 = vdwg.mxu0
    %v290 = vmul.f32 %v187, %v282
    %v291 = vmul.f32 %v192, %v287
    %v292 = vld [vmem:[#allocation10] sm:$0xff]
    %v293 = vld [vmem:[#allocation10 + $0x8] sm:$0xff]
    %v294 = vld [vmem:[#allocation10 + $0x10] sm:$0xff]
    %v295 = vld [vmem:[#allocation10 + $0x18] sm:$0xff]
    %v296 = vld [vmem:[#allocation10 + $0x20] sm:$0xff]
    %v297 = vld [vmem:[#allocation10 + $0x28] sm:$0xff]
    %v298 = vld [vmem:[#allocation10 + $0x30] sm:$0xff]
    %v299 = vld [vmem:[#allocation10 + $0x38] sm:$0xff]
    %v300 = vld [vmem:[#allocation10 + $0x40] sm:$0xff]
    %v301 = vld [vmem:[#allocation10 + $0x48] sm:$0xff]
    %v302 = vld [vmem:[#allocation10 + $0x50] sm:$0xff]
    %v303 = vld [vmem:[#allocation10 + $0x58] sm:$0xff]
    %v304 = vld [vmem:[#allocation10 + $0x60] sm:$0xff]
    %v305 = vld [vmem:[#allocation10 + $0x68] sm:$0xff]
    %v306 = vld [vmem:[#allocation10 + $0x70] sm:$0xff]
    %v307 = vld [vmem:[#allocation10 + $0x78] sm:$0xff]
    %v308 = vld [vmem:[%s7] sm:$0x1]
    %v310 = vlaneseq
    %v311 = vshrl.u32 %v310, 7
    %v312 = vsub.s32 0, %v311
    %v313 = vrot.slane %v308, %v312
    %315 = vmatprep.subr.mxu0 0.0
    %316 = vmatpush1.msra.mxu0 %v292
    %317 = vmatprep.subr.mxu0 0.0
    %318 = vmatpush1.msra.mxu0 %v293
    %319 = vmatprep.subr.mxu0 0.0
    %320 = vmatpush1.msra.mxu0 %v294
    %321 = vmatprep.subr.mxu0 0.0
    %322 = vmatpush1.msra.mxu0 %v295
    %323 = vmatprep.subr.mxu0 0.0
    %324 = vmatpush1.msra.mxu0 %v296
    %325 = vmatprep.subr.mxu0 0.0
    %326 = vmatpush1.msra.mxu0 %v297
    %327 = vmatprep.subr.mxu0 0.0
    %328 = vmatpush1.msra.mxu0 %v298
    %329 = vmatprep.subr.mxu0 0.0
    %330 = vmatpush1.msra.mxu0 %v299
    %331 = vmatprep.subr.mxu0 0.0
    %332 = vmatpush1.msra.mxu0 %v300
    %333 = vmatprep.subr.mxu0 0.0
    %334 = vmatpush1.msra.mxu0 %v301
    %335 = vmatprep.subr.mxu0 0.0
    %336 = vmatpush1.msra.mxu0 %v302
    %337 = vmatprep.subr.mxu0 0.0
    %338 = vmatpush1.msra.mxu0 %v303
    %339 = vmatprep.subr.mxu0 0.0
    %340 = vmatpush1.msra.mxu0 %v304
    %341 = vmatprep.subr.mxu0 0.0
    %342 = vmatpush1.msra.mxu0 %v305
    %343 = vmatprep.subr.mxu0 0.0
    %344 = vmatpush1.msra.mxu0 %v306
    %345 = vmatprep.subr.mxu0 0.0
    %346 = vmatpush1.msra.mxu0 %v307
    %347 = vmatprep.subr.mxu0 0.0
    %348 = vmatpush1.msra.mxu0 0.0
    %349 = vmatprep.subr.mxu0 0.0
    %350 = vmatpush1.msra.mxu0 0.0
    %351 = vmatprep.subr.mxu0 0.0
    %352 = vmatpush1.msra.mxu0 0.0
    %353 = vmatprep.subr.mxu0 0.0
    %354 = vmatpush1.msra.mxu0 0.0
    %355 = vmatprep.subr.mxu0 0.0
    %356 = vmatpush1.msra.mxu0 0.0
    %357 = vmatprep.subr.mxu0 0.0
    %358 = vmatpush1.msra.mxu0 0.0
    %359 = vmatprep.subr.mxu0 0.0
    %360 = vmatpush1.msra.mxu0 0.0
    %361 = vmatprep.subr.mxu0 0.0
    %362 = vmatpush1.msra.mxu0 0.0
    %363 = vmatprep.subr.mxu0 0.0
    %364 = vmatpush1.msra.mxu0 0.0
    %365 = vmatprep.subr.mxu0 0.0
    %366 = vmatpush1.msra.mxu0 0.0
    %367 = vmatprep.subr.mxu0 0.0
    %368 = vmatpush1.msra.mxu0 0.0
    %369 = vmatprep.subr.mxu0 0.0
    %370 = vmatpush1.msra.mxu0 0.0
    %371 = vmatprep.subr.mxu0 0.0
    %372 = vmatpush1.msra.mxu0 0.0
    %373 = vmatprep.subr.mxu0 0.0
    %374 = vmatpush1.msra.mxu0 0.0
    %375 = vmatprep.subr.mxu0 0.0
    %376 = vmatpush1.msra.mxu0 0.0
    %377 = vmatprep.subr.mxu0 0.0
    %378 = vmatpush1.msra.mxu0 0.0
    %379 = vmatprep.mubr.f32.mxu0 0.0
    %380 = vmatmul.mubr.f32.gmra.mrb[0].mxu0 %v290
    %v381 = vpop.f32.mrb[0].mxu0
    %v382 = vadd.f32 %v313, %v381
    %v383 = vpop.f32.mrb[0].mxu0
    %384 = vmatprep.mubr.f32.mxu0 0.0
    %385 = vmatmul.mubr.f32.gmra.mrb[0].mxu0 %v291
    %v386 = vpop.f32.mrb[0].mxu0
    %v387 = vadd.f32 %v313, %v386
    %v388 = vpop.f32.mrb[0].mxu0
    %389 = vdwg.mxu0
    %390 = vst [vmem:[#allocation11] sm:$0xff] %v382
    %391 = vst [vmem:[#allocation11 + $0x8] sm:$0xff] %v387
    // Predicated region
    $region54: #{tpu_custom_call.1} parent=1 // pred_check
      _
    $region55: #{tpu_custom_call.1} parent=1 // pred_check_branch
      %393 = sbr.rel (0) target = $region57
    $region56: #{tpu_custom_call.1} parent=1 // pred_region
      %s395 = ssub.s32 256, 256
      %396 = vsyncadd [#allocation4], %s395
      %s397 = sshll.u32 [#allocation11], 4
      %s398 = int_to_ptr.vmem [resolvable:$true] %s397
      %403 = dma.vmem_to_hbm [thread:$0]  %s398, 256, %s8, [#allocation4], 128, 128, 8
    $region57: #{tpu_custom_call.1} parent=1 // pred_fallthru
      _
    // Predicated region
    $region58: #{tpu_custom_call.1} parent=1 // pred_check
      _
    $region59: #{tpu_custom_call.1} parent=1 // pred_check_branch
      %405 = sbr.rel (0) target = $region61
    $region60: #{tpu_custom_call.1} parent=1 // pred_region
      %406 = dma.done [#allocation4], 256
    $region61: #{tpu_custom_call.1} parent=1 // pred_fallthru
      _
    %407 = vsyncpa [#allocation3], 1
    %408 = vsyncpa [#allocation6], 1
    %409 = vsyncpa [#allocation9], 1
    %410 = vsyncpa [#allocation4], 1

// kernel: tpu_custom_call.1
$region0: #{tpu_custom_call.1}
  #allocation0 [shape = 'u32[]', space=smem, size = 0x4, offset = 0x4, fixed_abs, tag = 'smem constant byte address 0x4 - core index']
  #allocation1 [shape = 'u32[144,128]{1,0:T(1,128)}', space=vmem, size = 0x12000, scoped, tag = 'internal scratch']
  %s0 = inlined_call_operand.hbm [shape: f32[16,15], index: 0, kind: input, shape index: {}]
  %s1 = inlined_call_operand.hbm [shape: f32[16,32], index: 1, kind: input, shape index: {}]
  %s2 = inlined_call_operand.hbm [shape: f32[15,128], index: 2, kind: input, shape index: {}]
  %s3 = inlined_call_operand.hbm [shape: f32[32,128], index: 3, kind: input, shape index: {}]
  %s4 = inlined_call_operand.vmem [shape: f32[1,128], index: 4, kind: input, shape index: {}]
  %s5 = inlined_call_operand.vmem [shape: f32[1,128], index: 5, kind: input, shape index: {}]
  %s6 = inlined_call_operand.hbm [shape: f32[128,128], index: 6, kind: input, shape index: {}]
  %s7 = inlined_call_operand.vmem [shape: f32[1,128], index: 7, kind: input, shape index: {}]
  %s8 = inlined_call_operand.hbm [shape: f32[16,128], index: 8, kind: output, shape index: {}]
  %s9 = sld [smem:[#allocation0]]
  $region62: #{tpu_custom_call.1} parent=0
    _
  %s11 = ssub.s32 1, %s9
  %s12 = scalar_select 0, %s11, %s9
  $region1: #{tpu_custom_call.1} parent=0
    #allocation2 [shape = 'u8[8192]{0}', space=vmem, size = 0x2000, scoped, tag = 'input window, operand 0, single buffered']
    #allocation3 [shape = 's32[1]{0}', space=sflag, size = 0x4, scoped, tag = 'scoped memory for tpu_custom_call.1']
    #allocation4 [shape = 's32[1]{0}', space=sflag, size = 0x4, scoped, tag = 'scoped memory for tpu_custom_call.1']
    #allocation5 [shape = 'u8[8192]{0}', space=vmem, size = 0x2000, scoped, tag = 'input window, operand 1, single buffered']
    #allocation6 [shape = 's32[1]{0}', space=sflag, size = 0x4, scoped, tag = 'scoped memory for tpu_custom_call.1']
    #allocation7 [shape = 'u8[8192]{0}', space=vmem, size = 0x2000, scoped, tag = 'input window, operand 2, single buffered']
    #allocation8 [shape = 'u8[16384]{0}', space=vmem, size = 0x4000, scoped, tag = 'input window, operand 3, single buffered']
    #allocation9 [shape = 's32[1]{0}', space=sflag, size = 0x4, scoped, tag = 'scoped memory for tpu_custom_call.1']
    #allocation10 [shape = 'u8[65536]{0}', space=vmem, size = 0x10000, scoped, tag = 'input window, operand 6, single buffered']
    #allocation11 [shape = 'u8[8192]{0}', space=vmem, size = 0x2000, scoped, tag = 'output window, operand 0, single buffered']
    %13 = vsyncpa [#allocation3], 0
    %14 = vsyncpa [#allocation6], 0
    %15 = vsyncpa [#allocation9], 0
    %16 = vsyncpa [#allocation4], 0
    // Predicated region
    $region2: #{tpu_custom_call.1} parent=1 // pred_check
      _
    $region3: #{tpu_custom_call.1} parent=1 // pred_check_branch
      %18 = sbr.rel (0) target = $region5
    $region4: #{tpu_custom_call.1} parent=1 // pred_region
      %s20 = ssub.s32 256, 256
      %21 = vsyncadd [#allocation3], %s20
      %s22 = sshll.u32 [#allocation2], 4
      %s23 = int_to_ptr.vmem [resolvable:$true] %s22
      %28 = dma.hbm_to_vmem [thread:$0]  %s0, 256, %s23, [#allocation3], 128, 128, 8
    $region5: #{tpu_custom_call.1} parent=1 // pred_fallthru
      _
    // Predicated region
    $region6: #{tpu_custom_call.1} parent=1 // pred_check
      _
    $region7: #{tpu_custom_call.1} parent=1 // pred_check_branch
      %30 = sbr.rel (0) target = $region9
    $region8: #{tpu_custom_call.1} parent=1 // pred_region
      %s32 = ssub.s32 256, 256
      %33 = vsyncadd [#allocation6], %s32
      %s34 = sshll.u32 [#allocation5], 4
      %s35 = int_to_ptr.vmem [resolvable:$true] %s34
      %40 = dma.hbm_to_vmem [thread:$0]  %s1, 256, %s35, [#allocation6], 128, 128, 8
    $region9: #{tpu_custom_call.1} parent=1 // pred_fallthru
      _
    // Predicated region
    $region10: #{tpu_custom_call.1} parent=1 // pred_check
      _
    $region11: #{tpu_custom_call.1} parent=1 // pred_check_branch
      %42 = sbr.rel (0) target = $region13
    $region12: #{tpu_custom_call.1} parent=1 // pred_region
      %s44 = ssub.s32 256, 256
      %45 = vsyncadd [#allocation6], %s44
      %s46 = sshll.u32 [#allocation7], 4
      %s47 = int_to_ptr.vmem [resolvable:$true] %s46
      %52 = dma.hbm_to_vmem [thread:$0]  %s2, 256, %s47, [#allocation6], 128, 128, 8
    $region13: #{tpu_custom_call.1} parent=1 // pred_fallthru
      _
    // Predicated region
    $region14: #{tpu_custom_call.1} parent=1 // pred_check
      _
    $region15: #{tpu_custom_call.1} parent=1 // pred_check_branch
      %54 = sbr.rel (0) target = $region17
    $region16: #{tpu_custom_call.1} parent=1 // pred_region
      %s56 = ssub.s32 512, 512
      %57 = vsyncadd [#allocation9], %s56
      %s58 = sshll.u32 [#allocation8], 4
      %s59 = int_to_ptr.vmem [resolvable:$true] %s58
      %64 = dma.hbm_to_vmem [thread:$0]  %s3, 512, %s59, [#allocation9], 128, 128, 8
    $region17: #{tpu_custom_call.1} parent=1 // pred_fallthru
      _
    // Predicated region
    $region18: #{tpu_custom_call.1} parent=1 // pred_check
      _
    $region19: #{tpu_custom_call.1} parent=1 // pred_check_branch
      %66 = sbr.rel (0) target = $region21
    $region20: #{tpu_custom_call.1} parent=1 // pred_region
      _
    $region21: #{tpu_custom_call.1} parent=1 // pred_fallthru
      _
    // Predicated region
    $region22: #{tpu_custom_call.1} parent=1 // pred_check
      _
    $region23: #{tpu_custom_call.1} parent=1 // pred_check_branch
      %68 = sbr.rel (0) target = $region25
    $region24: #{tpu_custom_call.1} parent=1 // pred_region
      _
    $region25: #{tpu_custom_call.1} parent=1 // pred_fallthru
      _
    // Predicated region
    $region26: #{tpu_custom_call.1} parent=1 // pred_check
      _
    $region27: #{tpu_custom_call.1} parent=1 // pred_check_branch
      %70 = sbr.rel (0) target = $region29
    $region28: #{tpu_custom_call.1} parent=1 // pred_region
      %s72 = ssub.s32 2048, 2048
      %73 = vsyncadd [#allocation9], %s72
      %s74 = sshll.u32 [#allocation10], 4
      %s75 = int_to_ptr.vmem [resolvable:$true] %s74
      %80 = dma.hbm_to_vmem [thread:$0]  %s6, 2048, %s75, [#allocation9], 128, 128, 8
    $region29: #{tpu_custom_call.1} parent=1 // pred_fallthru
      _
    // Predicated region
    $region30: #{tpu_custom_call.1} parent=1 // pred_check
      _
    $region31: #{tpu_custom_call.1} parent=1 // pred_check_branch
      %82 = sbr.rel (0) target = $region33
    $region32: #{tpu_custom_call.1} parent=1 // pred_region
      _
    $region33: #{tpu_custom_call.1} parent=1 // pred_fallthru
      _
    // Predicated region
    $region34: #{tpu_custom_call.1} parent=1 // pred_check
      _
    $region35: #{tpu_custom_call.1} parent=1 // pred_check_branch
      %84 = sbr.rel (0) target = $region37
    $region36: #{tpu_custom_call.1} parent=1 // pred_region
      %85 = dma.done [#allocation3], 256
    $region37: #{tpu_custom_call.1} parent=1 // pred_fallthru
      _
    // Predicated region
    $region38: #{tpu_custom_call.1} parent=1 // pred_check
      _
    $region39: #{tpu_custom_call.1} parent=1 // pred_check_branch
      %87 = sbr.rel (0) target = $region41
    $region40: #{tpu_custom_call.1} parent=1 // pred_region
      %88 = dma.done [#allocation6], 256
    $region41: #{tpu_custom_call.1} parent=1 // pred_fallthru
      _
    // Predicated region
    $region42: #{tpu_custom_call.1} parent=1 // pred_check
      _
    $region43: #{tpu_custom_call.1} parent=1 // pred_check_branch
      %90 = sbr.rel (0) target = $region45
    $region44: #{tpu_custom_call.1} parent=1 // pred_region
      %91 = dma.done [#allocation6], 256
    $region45: #{tpu_custom_call.1} parent=1 // pred_fallthru
      _
    // Predicated region
    $region46: #{tpu_custom_call.1} parent=1 // pred_check
      _
    $region47: #{tpu_custom_call.1} parent=1 // pred_check_branch
      %93 = sbr.rel (0) target = $region49
    $region48: #{tpu_custom_call.1} parent=1 // pred_region
      %94 = dma.done [#allocation9], 512
    $region49: #{tpu_custom_call.1} parent=1 // pred_fallthru
      _
    // Predicated region
    $region50: #{tpu_custom_call.1} parent=1 // pred_check
      _
    $region51: #{tpu_custom_call.1} parent=1 // pred_check_branch
      %96 = sbr.rel (0) target = $region53
    $region52: #{tpu_custom_call.1} parent=1 // pred_region
      %97 = dma.done [#allocation9], 2048
    $region53: #{tpu_custom_call.1} parent=1 // pred_fallthru
      _
    %v98 = vld [vmem:[#allocation2] sm:$0xff]
    %v99 = vld [vmem:[#allocation2 + $0x8] sm:$0xff]
    %v100 = vld [vmem:[#allocation7] sm:$0xff]
    %v101 = vld [vmem:[#allocation7 + $0x8] sm:$0x7f]
    %v102 = vld [vmem:[%s4] sm:$0x1]
    %v104 = vlaneseq
    %v105 = vshrl.u32 %v104, 7
    %v106 = vsub.s32 0, %v105
    %v107 = vrot.slane %v102, %v106
    %vm109 = vcmask 121856
    %v111 = vsel %vm109, %v98, 0
    %v114 = vsel %vm109, %v99, 0
    %vm116 = vcmask 1046528
    %v118 = vsel %vm116, %v101, 0
    %120 = vmatprep.subr.mxu0 0.0
    %121 = vmatpush1.msra.mxu0 %v100
    %122 = vmatprep.subr.mxu0 0.0
    %123 = vmatpush1.msra.mxu0 %v118
    %124 = vmatprep.subr.mxu0 0.0
    %125 = vmatpush1.msra.mxu0 0.0
    %126 = vmatprep.subr.mxu0 0.0
    %127 = vmatpush1.msra.mxu0 0.0
    %128 = vmatprep.subr.mxu0 0.0
    %129 = vmatpush1.msra.mxu0 0.0
    %130 = vmatprep.subr.mxu0 0.0
    %131 = vmatpush1.msra.mxu0 0.0
    %132 = vmatprep.subr.mxu0 0.0
    %133 = vmatpush1.msra.mxu0 0.0
    %134 = vmatprep.subr.mxu0 0.0
    %135 = vmatpush1.msra.mxu0 0.0
    %136 = vmatprep.subr.mxu0 0.0
    %137 = vmatpush1.msra.mxu0 0.0
    %138 = vmatprep.subr.mxu0 0.0
    %139 = vmatpush1.msra.mxu0 0.0
    %140 = vmatprep.subr.mxu0 0.0
    %141 = vmatpush1.msra.mxu0 0.0
    %142 = vmatprep.subr.mxu0 0.0
    %143 = vmatpush1.msra.mxu0 0.0
    %144 = vmatprep.subr.mxu0 0.0
    %145 = vmatpush1.msra.mxu0 0.0
    %146 = vmatprep.subr.mxu0 0.0
    %147 = vmatpush1.msra.mxu0 0.0
    %148 = vmatprep.subr.mxu0 0.0
    %149 = vmatpush1.msra.mxu0 0.0
    %150 = vmatprep.subr.mxu0 0.0
    %151 = vmatpush1.msra.mxu0 0.0
    %152 = vmatprep.subr.mxu0 0.0
    %153 = vmatpush1.msra.mxu0 0.0
    %154 = vmatprep.subr.mxu0 0.0
    %155 = vmatpush1.msra.mxu0 0.0
    %156 = vmatprep.subr.mxu0 0.0
    %157 = vmatpush1.msra.mxu0 0.0
    %158 = vmatprep.subr.mxu0 0.0
    %159 = vmatpush1.msra.mxu0 0.0
    %160 = vmatprep.subr.mxu0 0.0
    %161 = vmatpush1.msra.mxu0 0.0
    %162 = vmatprep.subr.mxu0 0.0
    %163 = vmatpush1.msra.mxu0 0.0
    %164 = vmatprep.subr.mxu0 0.0
    %165 = vmatpush1.msra.mxu0 0.0
    %166 = vmatprep.subr.mxu0 0.0
    %167 = vmatpush1.msra.mxu0 0.0
    %168 = vmatprep.subr.mxu0 0.0
    %169 = vmatpush1.msra.mxu0 0.0
    %170 = vmatprep.subr.mxu0 0.0
    %171 = vmatpush1.msra.mxu0 0.0
    %172 = vmatprep.subr.mxu0 0.0
    %173 = vmatpush1.msra.mxu0 0.0
    %174 = vmatprep.subr.mxu0 0.0
    %175 = vmatpush1.msra.mxu0 0.0
    %176 = vmatprep.subr.mxu0 0.0
    %177 = vmatpush1.msra.mxu0 0.0
    %178 = vmatprep.subr.mxu0 0.0
    %179 = vmatpush1.msra.mxu0 0.0
    %180 = vmatprep.subr.mxu0 0.0
    %181 = vmatpush1.msra.mxu0 0.0
    %182 = vmatprep.subr.mxu0 0.0
    %183 = vmatpush1.msra.mxu0 0.0
    %184 = vmatprep.mubr.f32.mxu0 0.0
    %185 = vmatmul.mubr.f32.gmra.mrb[0].mxu0 %v111
    %v186 = vpop.f32.mrb[0].mxu0
    %v187 = vadd.f32 %v107, %v186
    %v188 = vpop.f32.mrb[0].mxu0
    %189 = vmatprep.mubr.f32.mxu0 0.0
    %190 = vmatmul.mubr.f32.gmra.mrb[0].mxu0 %v114
    %v191 = vpop.f32.mrb[0].mxu0
    %v192 = vadd.f32 %v107, %v191
    %v193 = vpop.f32.mrb[0].mxu0
    %194 = vdwg.mxu0
    %v195 = vld [vmem:[#allocation5] sm:$0xff]
    %v196 = vld [vmem:[#allocation5 + $0x8] sm:$0xff]
    %v197 = vld [vmem:[#allocation8] sm:$0xff]
    %v198 = vld [vmem:[#allocation8 + $0x8] sm:$0xff]
    %v199 = vld [vmem:[#allocation8 + $0x10] sm:$0xff]
    %v200 = vld [vmem:[#allocation8 + $0x18] sm:$0xff]
    %v201 = vld [vmem:[%s5] sm:$0x1]
    %v203 = vlaneseq
    %v204 = vshrl.u32 %v203, 7
    %v205 = vsub.s32 0, %v204
    %v206 = vrot.slane %v201, %v205
    %vm208 = vcmask 261120
    %v210 = vsel %vm208, %v195, 0
    %v213 = vsel %vm208, %v196, 0
    %215 = vmatprep.subr.mxu0 0.0
    %216 = vmatpush1.msra.mxu0 %v197
    %217 = vmatprep.subr.mxu0 0.0
    %218 = vmatpush1.msra.mxu0 %v198
    %219 = vmatprep.subr.mxu0 0.0
    %220 = vmatpush1.msra.mxu0 %v199
    %221 = vmatprep.subr.mxu0 0.0
    %222 = vmatpush1.msra.mxu0 %v200
    %223 = vmatprep.subr.mxu0 0.0
    %224 = vmatpush1.msra.mxu0 0.0
    %225 = vmatprep.subr.mxu0 0.0
    %226 = vmatpush1.msra.mxu0 0.0
    %227 = vmatprep.subr.mxu0 0.0
    %228 = vmatpush1.msra.mxu0 0.0
    %229 = vmatprep.subr.mxu0 0.0
    %230 = vmatpush1.msra.mxu0 0.0
    %231 = vmatprep.subr.mxu0 0.0
    %232 = vmatpush1.msra.mxu0 0.0
    %233 = vmatprep.subr.mxu0 0.0
    %234 = vmatpush1.msra.mxu0 0.0
    %235 = vmatprep.subr.mxu0 0.0
    %236 = vmatpush1.msra.mxu0 0.0
    %237 = vmatprep.subr.mxu0 0.0
    %238 = vmatpush1.msra.mxu0 0.0
    %239 = vmatprep.subr.mxu0 0.0
    %240 = vmatpush1.msra.mxu0 0.0
    %241 = vmatprep.subr.mxu0 0.0
    %242 = vmatpush1.msra.mxu0 0.0
    %243 = vmatprep.subr.mxu0 0.0
    %244 = vmatpush1.msra.mxu0 0.0
    %245 = vmatprep.subr.mxu0 0.0
    %246 = vmatpush1.msra.mxu0 0.0
    %247 = vmatprep.subr.mxu0 0.0
    %248 = vmatpush1.msra.mxu0 0.0
    %249 = vmatprep.subr.mxu0 0.0
    %250 = vmatpush1.msra.mxu0 0.0
    %251 = vmatprep.subr.mxu0 0.0
    %252 = vmatpush1.msra.mxu0 0.0
    %253 = vmatprep.subr.mxu0 0.0
    %254 = vmatpush1.msra.mxu0 0.0
    %255 = vmatprep.subr.mxu0 0.0
    %256 = vmatpush1.msra.mxu0 0.0
    %257 = vmatprep.subr.mxu0 0.0
    %258 = vmatpush1.msra.mxu0 0.0
    %259 = vmatprep.subr.mxu0 0.0
    %260 = vmatpush1.msra.mxu0 0.0
    %261 = vmatprep.subr.mxu0 0.0
    %262 = vmatpush1.msra.mxu0 0.0
    %263 = vmatprep.subr.mxu0 0.0
    %264 = vmatpush1.msra.mxu0 0.0
    %265 = vmatprep.subr.mxu0 0.0
    %266 = vmatpush1.msra.mxu0 0.0
    %267 = vmatprep.subr.mxu0 0.0
    %268 = vmatpush1.msra.mxu0 0.0
    %269 = vmatprep.subr.mxu0 0.0
    %270 = vmatpush1.msra.mxu0 0.0
    %271 = vmatprep.subr.mxu0 0.0
    %272 = vmatpush1.msra.mxu0 0.0
    %273 = vmatprep.subr.mxu0 0.0
    %274 = vmatpush1.msra.mxu0 0.0
    %275 = vmatprep.subr.mxu0 0.0
    %276 = vmatpush1.msra.mxu0 0.0
    %277 = vmatprep.subr.mxu0 0.0
    %278 = vmatpush1.msra.mxu0 0.0
    %279 = vmatprep.mubr.f32.mxu0 0.0
    %280 = vmatmul.mubr.f32.gmra.mrb[0].mxu0 %v210
    %v281 = vpop.f32.mrb[0].mxu0
    %v282 = vadd.f32 %v206, %v281
    %v283 = vpop.f32.mrb[0].mxu0
    %284 = vmatprep.mubr.f32.mxu0 0.0
    %285 = vmatmul.mubr.f32.gmra.mrb[0].mxu0 %v213
    %v286 = vpop.f32.mrb[0].mxu0
    %v287 = vadd.f32 %v206, %v286
    %v288 = vpop.f32.mrb[0].mxu0
    %289 = vdwg.mxu0
    %v290 = vmul.f32 %v187, %v282
    %v291 = vmul.f32 %v192, %v287
    %v292 = vld [vmem:[#allocation10] sm:$0xff]
    %v293 = vld [vmem:[#allocation10 + $0x8] sm:$0xff]
    %v294 = vld [vmem:[#allocation10 + $0x10] sm:$0xff]
    %v295 = vld [vmem:[#allocation10 + $0x18] sm:$0xff]
    %v296 = vld [vmem:[#allocation10 + $0x20] sm:$0xff]
    %v297 = vld [vmem:[#allocation10 + $0x28] sm:$0xff]
    %v298 = vld [vmem:[#allocation10 + $0x30] sm:$0xff]
    %v299 = vld [vmem:[#allocation10 + $0x38] sm:$0xff]
    %v300 = vld [vmem:[#allocation10 + $0x40] sm:$0xff]
    %v301 = vld [vmem:[#allocation10 + $0x48] sm:$0xff]
    %v302 = vld [vmem:[#allocation10 + $0x50] sm:$0xff]
    %v303 = vld [vmem:[#allocation10 + $0x58] sm:$0xff]
    %v304 = vld [vmem:[#allocation10 + $0x60] sm:$0xff]
    %v305 = vld [vmem:[#allocation10 + $0x68] sm:$0xff]
    %v306 = vld [vmem:[#allocation10 + $0x70] sm:$0xff]
    %v307 = vld [vmem:[#allocation10 + $0x78] sm:$0xff]
    %v308 = vld [vmem:[%s7] sm:$0x1]
    %v310 = vlaneseq
    %v311 = vshrl.u32 %v310, 7
    %v312 = vsub.s32 0, %v311
    %v313 = vrot.slane %v308, %v312
    %315 = vmatprep.subr.mxu0 0.0
    %316 = vmatpush1.msra.mxu0 %v292
    %317 = vmatprep.subr.mxu0 0.0
    %318 = vmatpush1.msra.mxu0 %v293
    %319 = vmatprep.subr.mxu0 0.0
    %320 = vmatpush1.msra.mxu0 %v294
    %321 = vmatprep.subr.mxu0 0.0
    %322 = vmatpush1.msra.mxu0 %v295
    %323 = vmatprep.subr.mxu0 0.0
    %324 = vmatpush1.msra.mxu0 %v296
    %325 = vmatprep.subr.mxu0 0.0
    %326 = vmatpush1.msra.mxu0 %v297
    %327 = vmatprep.subr.mxu0 0.0
    %328 = vmatpush1.msra.mxu0 %v298
    %329 = vmatprep.subr.mxu0 0.0
    %330 = vmatpush1.msra.mxu0 %v299
    %331 = vmatprep.subr.mxu0 0.0
    %332 = vmatpush1.msra.mxu0 %v300
    %333 = vmatprep.subr.mxu0 0.0
    %334 = vmatpush1.msra.mxu0 %v301
    %335 = vmatprep.subr.mxu0 0.0
    %336 = vmatpush1.msra.mxu0 %v302
    %337 = vmatprep.subr.mxu0 0.0
    %338 = vmatpush1.msra.mxu0 %v303
    %339 = vmatprep.subr.mxu0 0.0
    %340 = vmatpush1.msra.mxu0 %v304
    %341 = vmatprep.subr.mxu0 0.0
    %342 = vmatpush1.msra.mxu0 %v305
    %343 = vmatprep.subr.mxu0 0.0
    %344 = vmatpush1.msra.mxu0 %v306
    %345 = vmatprep.subr.mxu0 0.0
    %346 = vmatpush1.msra.mxu0 %v307
    %347 = vmatprep.subr.mxu0 0.0
    %348 = vmatpush1.msra.mxu0 0.0
    %349 = vmatprep.subr.mxu0 0.0
    %350 = vmatpush1.msra.mxu0 0.0
    %351 = vmatprep.subr.mxu0 0.0
    %352 = vmatpush1.msra.mxu0 0.0
    %353 = vmatprep.subr.mxu0 0.0
    %354 = vmatpush1.msra.mxu0 0.0
    %355 = vmatprep.subr.mxu0 0.0
    %356 = vmatpush1.msra.mxu0 0.0
    %357 = vmatprep.subr.mxu0 0.0
    %358 = vmatpush1.msra.mxu0 0.0
    %359 = vmatprep.subr.mxu0 0.0
    %360 = vmatpush1.msra.mxu0 0.0
    %361 = vmatprep.subr.mxu0 0.0
    %362 = vmatpush1.msra.mxu0 0.0
    %363 = vmatprep.subr.mxu0 0.0
    %364 = vmatpush1.msra.mxu0 0.0
    %365 = vmatprep.subr.mxu0 0.0
    %366 = vmatpush1.msra.mxu0 0.0
    %367 = vmatprep.subr.mxu0 0.0
    %368 = vmatpush1.msra.mxu0 0.0
    %369 = vmatprep.subr.mxu0 0.0
    %370 = vmatpush1.msra.mxu0 0.0
    %371 = vmatprep.subr.mxu0 0.0
    %372 = vmatpush1.msra.mxu0 0.0
    %373 = vmatprep.subr.mxu0 0.0
    %374 = vmatpush1.msra.mxu0 0.0
    %375 = vmatprep.subr.mxu0 0.0
    %376 = vmatpush1.msra.mxu0 0.0
    %377 = vmatprep.subr.mxu0 0.0
    %378 = vmatpush1.msra.mxu0 0.0
    %379 = vmatprep.mubr.f32.mxu0 0.0
    %380 = vmatmul.mubr.f32.gmra.mrb[0].mxu0 %v290
    %v381 = vpop.f32.mrb[0].mxu0
    %v382 = vadd.f32 %v313, %v381
    %v383 = vpop.f32.mrb[0].mxu0
    %384 = vmatprep.mubr.f32.mxu0 0.0
    %385 = vmatmul.mubr.f32.gmra.mrb[0].mxu0 %v291
    %v386 = vpop.f32.mrb[0].mxu0
    %v387 = vadd.f32 %v313, %v386
    %v388 = vpop.f32.mrb[0].mxu0
    %389 = vdwg.mxu0
    %390 = vst [vmem:[#allocation11] sm:$0xff] %v382
    %391 = vst [vmem:[#allocation11 + $0x8] sm:$0xff] %v387
    // Predicated region
    $region54: #{tpu_custom_call.1} parent=1 // pred_check
      _
    $region55: #{tpu_custom_call.1} parent=1 // pred_check_branch
      %393 = sbr.rel (0) target = $region57
    $region56: #{tpu_custom_call.1} parent=1 // pred_region
      %s395 = ssub.s32 256, 256
      %396 = vsyncadd [#allocation4], %s395
      %s397 = sshll.u32 [#allocation11], 4
      %s398 = int_to_ptr.vmem [resolvable:$true] %s397
      %403 = dma.vmem_to_hbm [thread:$0]  %s398, 256, %s8, [#allocation4], 128, 128, 8
    $region57: #{tpu_custom_call.1} parent=1 // pred_fallthru
      _
    // Predicated region
    $region58: #{tpu_custom_call.1} parent=1 // pred_check
      _
    $region59: #{tpu_custom_call.1} parent=1 // pred_check_branch
      %405 = sbr.rel (0) target = $region61
    $region60: #{tpu_custom_call.1} parent=1 // pred_region
      %406 = dma.done [#allocation4], 256
    $region61: #{tpu_custom_call.1} parent=1 // pred_fallthru
      _
    %407 = vsyncpa [#allocation3], 1
    %408 = vsyncpa [#allocation6], 1
    %409 = vsyncpa [#allocation9], 1
    %410 = vsyncpa [#allocation4], 1

</llo_original>
